<compile_context>
chip_gen: v6e
topology: v6e:2x2x1
jax: 0.10.0
libtpu: 0.0.40
codegen_flags: <defaults>
</compile_context>

<pallas_src>
import numpy as np
import jax
import jax.numpy as jnp
from jax import lax
from jax.experimental import pallas as pl
from jax.experimental.pallas import tpu as pltpu  # noqa: F401

# ----------------------------- configuration --------------------------------
PART = 4
C_IN = 12
HIDDEN = C_IN // 3          # 4
C_OUT = 8
B, H, W = 2, 16, 16
HW = H * W                  # 256
PH = PART * HIDDEN          # 16
EPS = 1e-5

BP = B * PART               # 8   batch-folded part rows
BCIN = B * C_IN             # 24  batch-folded input-channel rows
BCO = B * C_OUT             # 16  batch-folded output-channel rows
KIN = BCIN + PART           # 28  final-matmul contraction (x rows + indicator rows)

# part boundaries exactly as in the PyTorch forward
IHS = [0]
for i in range(PART):
    IHS.append(min(H, int((i + 1) * (float(H) / PART))))

# ---- row offsets inside the single packed parameter slab (PAR_ROWS, HW) ----
R_APOOL = 0                      # (BP, HW)        per-(batch,part) avg-pool weights
R_PMASK = R_APOOL + BP           # (BP, KIN)       batch-block-diag pool mask
R_FOLDC = R_PMASK + BP           # (KIN, C_IN)     fold B*C_IN -> C_IN  ([I; I; 0])
R_WALL = R_FOLDC + KIN           # (C_IN, PH)      stacked local-conv weights (BN folded)
R_SEL = R_WALL + C_IN            # (BP, PH)        per-part block-diag selection
R_FOLDH = R_SEL + BP             # (HIDDEN, PH)    fold PH -> HIDDEN
R_BLOC = R_FOLDH + HIDDEN        # (BP, HIDDEN)    local-conv bias (BN folded), batch-tiled
R_WK = R_BLOC + BP               # (HIDDEN, HIDDEN) W_K^T
R_BK = R_WK + HIDDEN             # (1, HIDDEN)
R_WQ = R_BK + 1                  # (HIDDEN, HIDDEN) W_Q^T
R_BQ = R_WQ + HIDDEN             # (1, HIDDEN)
R_AMSK = R_BQ + 1                # (BP, BP)        cross-batch attention mask (0 / -1e30)
R_WFH = R_AMSK + BP              # (C_OUT, HIDDEN) final-conv hidden-part weights
R_SHIFT = R_WFH + C_OUT          # (BCO, 1)        final BN beta, batch-tiled
R_WXBD = R_SHIFT + BCO           # (BCO, KIN)      blkdiag final-conv x-weights (ind cols 0)
R_PLACE = R_WXBD + BCO           # (PART, KIN)     places gT columns at lanes BCIN:KIN
PAR_ROWS = R_PLACE + PART        # 138


# ------------------------------- kernel --------------------------------------
def part_aware_kernel(xin_ref, par_ref, out_ref):
    """Fused batch-folded PartAwareOp forward.

    xin_ref : (KIN, HW) bf16   rows [0:B*C_IN)  = x, channel-major, batch-stacked
                               rows [B*C_IN:KIN)= constant 0/1 part indicators
    par_ref : (PAR_ROWS, HW) f32  packed constants (see row-offset table above)
    out_ref : (B*C_OUT, HW) f32
    """
    f32 = jnp.float32
    bf16 = jnp.bfloat16
    dn_tb = (((1,), (1,)), ((), ()))          # contract last dims of both (A @ B^T)

    xin = xin_ref[...]                        # (KIN, HW) bf16

    a_pool = par_ref[R_APOOL:R_APOOL + BP, :]                 # (BP, HW)
    pmask = par_ref[R_PMASK:R_PMASK + BP, 0:KIN]              # (BP, KIN)
    foldc = par_ref[R_FOLDC:R_FOLDC + KIN, 0:C_IN]            # (KIN, C_IN)
    w_all = par_ref[R_WALL:R_WALL + C_IN, 0:PH]               # (C_IN, PH)
    sel = par_ref[R_SEL:R_SEL + BP, 0:PH]                     # (BP, PH)
    foldh = par_ref[R_FOLDH:R_FOLDH + HIDDEN, 0:PH]           # (HIDDEN, PH)
    bloc = par_ref[R_BLOC:R_BLOC + BP, 0:HIDDEN]              # (BP, HIDDEN)
    wkT = par_ref[R_WK:R_WK + HIDDEN, 0:HIDDEN]               # (HIDDEN, HIDDEN)
    bk = par_ref[R_BK:R_BK + 1, 0:HIDDEN]                     # (1, HIDDEN)
    wqT = par_ref[R_WQ:R_WQ + HIDDEN, 0:HIDDEN]               # (HIDDEN, HIDDEN)
    bq = par_ref[R_BQ:R_BQ + 1, 0:HIDDEN]                     # (1, HIDDEN)
    amask = par_ref[R_AMSK:R_AMSK + BP, 0:BP]                 # (BP, BP)
    wfh = par_ref[R_WFH:R_WFH + C_OUT, 0:HIDDEN]              # (C_OUT, HIDDEN)
    shift = par_ref[R_SHIFT:R_SHIFT + BCO, 0:1]               # (BCO, 1)
    wx_bd = par_ref[R_WXBD:R_WXBD + BCO, 0:KIN]               # (BCO, KIN)
    place = par_ref[R_PLACE:R_PLACE + PART, 0:KIN]            # (PART, KIN)

    # 1) per-(batch, part) adaptive avg-pool: one lane-dense K=HW matmul in bf16
    #    (MXU native), then a tiny masked fold strips the cross-batch terms.
    raw = lax.dot_general(a_pool.astype(bf16), xin, dn_tb,
                          preferred_element_type=f32)                   # (BP, KIN)
    pooled = jnp.dot(raw * pmask, foldc, preferred_element_type=f32)    # (BP, C_IN)
    pf = jnp.maximum(pooled, 0.0)

    # 2) per-part 1x1 conv (+BN folded): one stacked matmul + block-diag select + fold.
    full = jnp.dot(pf, w_all, preferred_element_type=f32)               # (BP, PH)
    part_feat = lax.dot_general(full * sel, foldh, dn_tb,
                                preferred_element_type=f32) + bloc      # (BP, HIDDEN)

    # 3) part attention for both batches at once; cross-batch logits masked to -1e30.
    k = jnp.dot(part_feat, wkT, preferred_element_type=f32) + bk        # (BP, HIDDEN)
    q = jnp.dot(part_feat, wqT, preferred_element_type=f32) + bq        # (BP, HIDDEN)
    logits = lax.dot_general(k, q, dn_tb, preferred_element_type=f32) + amask
    logits = logits - jnp.max(logits, axis=-1, keepdims=True)
    e = jnp.exp(logits)
    att = e * pl.reciprocal(jnp.sum(e, axis=-1, keepdims=True), approx=True)
    agg = jnp.dot(att, part_feat, preferred_element_type=f32)           # (BP, HIDDEN)

    # 4) final 1x1 conv + BN, fused into ONE lane-dense matmul:
    #    LHS = blkdiag(wx)  +  (per-batch gT placed at lanes BCIN:KIN),
    #    RHS = [x ; part indicator] already packed by the wrapper.
    gT = lax.dot_general(wfh, agg, dn_tb, preferred_element_type=f32)   # (C_OUT, BP)
    gT_stk = jnp.concatenate([gT[:, 0:PART], gT[:, PART:BP]], axis=0) + shift  # (BCO, PART)
    lhs = (wx_bd + jnp.dot(gT_stk, place, preferred_element_type=f32)).astype(bf16)
    out_ref[...] = jnp.dot(lhs, xin, preferred_element_type=f32)        # (BCO, HW)


# ------------------------------- wrapper --------------------------------------
def part_aware_forward(x_nchw, params):
    b, c, h, w = x_nchw.shape
    # NCHW is already channel-major, so (B*C_IN, HW) is a pure reshape. Append
    # the constant part-indicator rows so the final conv is ONE fused matmul,
    # and feed bf16 to the two K=HW matmuls (f32 accumulation in-kernel).
    xin = jnp.concatenate([x_nchw.reshape(b * c, h * w),
                           params["ind_rows"]], axis=0).astype(jnp.bfloat16)
    out = pl.pallas_call(
        part_aware_kernel,
        out_shape=jax.ShapeDtypeStruct((b * C_OUT, h * w), jnp.float32),
        # No grid / BlockSpecs: the whole working set (<200 KB) lives in VMEM
        # on v5e/v6e/v7x; a grid would only add per-step overhead.
        # TODO(synk): on v7x a core-parallel grid=(2,) split over the 2 TCs is
        #             only worth trying if xprof shows >~4 us wall; default
        #             single-core batch-folded version is kept here.
        cost_estimate=pl.CostEstimate(
            flops=2 * HW * KIN * (BP + BCO) + 16_000,
            transcendentals=BP * BP + BP,
            bytes_accessed=KIN * HW * 2 + PAR_ROWS * HW * 4 + BCO * HW * 4),
    )(xin, params["packed"])
    return out.reshape(b, C_OUT, h, w)


# --------------------------- pure-JAX reference -------------------------------
def reference_forward(x, raw):
    bsz = x.shape[0]
    inv_std = 1.0 / jnp.sqrt(1.0 + EPS)
    feats = []
    for p in range(PART):
        h0, h1 = IHS[p], IHS[p + 1]
        pooled = jnp.mean(x[:, :, h0:h1, :], axis=(2, 3))              # (B, C_in)
        z = jnp.maximum(pooled, 0.0) @ raw["w_loc"][p].T + raw["b_loc"][p]
        z = z * (raw["g_loc"][p] * inv_std) + raw["be_loc"][p]
        feats.append(z)
    part_feat = jnp.stack(feats, axis=1)                               # (B, P, hid)
    k = part_feat @ raw["w_k"].T + raw["b_k"]
    q = part_feat @ raw["w_q"].T + raw["b_q"]
    att = jax.nn.softmax(jnp.einsum("bph,bqh->bpq", k, q), axis=2)
    agg = jnp.einsum("bpq,bqh->bph", att, part_feat)                   # (B, P, hid)
    row_part = np.zeros(H, dtype=np.int32)
    for p in range(PART):
        row_part[IHS[p]:IHS[p + 1]] = p
    rowfeat = agg[:, row_part, :]                                      # (B, H, hid)
    features = jnp.broadcast_to(jnp.transpose(rowfeat, (0, 2, 1))[:, :, :, None],
                                (bsz, HIDDEN, H, W))
    final = jnp.concatenate([x, features], axis=1)
    conv = jnp.einsum("bchw,oc->bohw", final, raw["w_last"])
    return conv * (raw["g_last"] * inv_std)[None, :, None, None] \
        + raw["be_last"][None, :, None, None]


# ------------------------------ parameter setup -------------------------------
def make_params(key):
    ks = jax.random.split(key, 12)
    s = 0.1
    raw = dict(
        w_loc=s * jax.random.normal(ks[0], (PART, HIDDEN, C_IN), jnp.float32),
        b_loc=s * jax.random.normal(ks[1], (PART, HIDDEN), jnp.float32),
        g_loc=1.0 + s * jax.random.normal(ks[2], (PART, HIDDEN), jnp.float32),
        be_loc=s * jax.random.normal(ks[3], (PART, HIDDEN), jnp.float32),
        w_k=s * jax.random.normal(ks[4], (HIDDEN, HIDDEN), jnp.float32),
        b_k=s * jax.random.normal(ks[5], (HIDDEN,), jnp.float32),
        w_q=s * jax.random.normal(ks[6], (HIDDEN, HIDDEN), jnp.float32),
        b_q=s * jax.random.normal(ks[7], (HIDDEN,), jnp.float32),
        w_last=s * jax.random.normal(ks[8], (C_OUT, C_IN + HIDDEN), jnp.float32),
        g_last=1.0 + s * jax.random.normal(ks[9], (C_OUT,), jnp.float32),
        be_last=s * jax.random.normal(ks[10], (C_OUT,), jnp.float32),
    )
    inv_std = float(1.0 / np.sqrt(1.0 + EPS))

    # per-part avg-pool weights + 0/1 pixel indicator (both exact in bf16)
    a_pool = np.zeros((PART, HW), np.float32)
    ind = np.zeros((PART, HW), np.float32)
    for p in range(PART):
        h0, h1 = IHS[p], IHS[p + 1]
        a_pool[p, h0 * W:h1 * W] = 1.0 / ((h1 - h0) * W)
        ind[p, h0 * W:h1 * W] = 1.0

    # batch-block-diag pool mask + channel fold (B*C_IN -> C_IN)
    pmask = np.zeros((BP, KIN), np.float32)
    foldc = np.zeros((KIN, C_IN), np.float32)
    for bb in range(B):
        pmask[bb * PART:(bb + 1) * PART, bb * C_IN:(bb + 1) * C_IN] = 1.0
        foldc[bb * C_IN:(bb + 1) * C_IN, :] = np.eye(C_IN, dtype=np.float32)

    # local 1x1 convs with BN folded; stacked + block-diag selection + fold
    w_loc = np.asarray(raw["w_loc"]); g_loc = np.asarray(raw["g_loc"])
    b_loc = np.asarray(raw["b_loc"]); be_loc = np.asarray(raw["be_loc"])
    wloc_fold = np.transpose(w_loc, (0, 2, 1)) * (g_loc * inv_std)[:, None, :]   # (P, C, Hd)
    w_all = np.transpose(wloc_fold, (1, 0, 2)).reshape(C_IN, PH)                 # (C, P*Hd)
    sel = np.kron(np.eye(PART, dtype=np.float32),
                  np.ones((1, HIDDEN), dtype=np.float32))                        # (P, P*Hd)
    foldh = np.tile(np.eye(HIDDEN, dtype=np.float32), (1, PART))                 # (Hd, P*Hd)
    bloc_fold = b_loc * g_loc * inv_std + be_loc                                 # (P, Hd)

    # cross-batch attention mask
    amask = np.full((BP, BP), -1e30, np.float32)
    for bb in range(B):
        amask[bb * PART:(bb + 1) * PART, bb * PART:(bb + 1) * PART] = 0.0

    # final 1x1 conv (FactorizedReduce stride=1) + BN folded
    w_last = np.asarray(raw["w_last"])
    scale_last = np.asarray(raw["g_last"]) * inv_std
    wx = w_last[:, :C_IN] * scale_last[:, None]                                  # (C_OUT, C_IN)
    wfh = w_last[:, C_IN:] * scale_last[:, None]                                 # (C_OUT, Hd)
    wx_bd = np.zeros((BCO, KIN), np.float32)
    for bb in range(B):
        wx_bd[bb * C_OUT:(bb + 1) * C_OUT, bb * C_IN:(bb + 1) * C_IN] = wx
    place = np.zeros((PART, KIN), np.float32)
    for p in range(PART):
        place[p, BCIN + p] = 1.0

    # ----------------- single packed parameter slab (one DMA) -----------------
    packed = np.zeros((PAR_ROWS, HW), np.float32)
    packed[R_APOOL:R_APOOL + BP, :] = np.tile(a_pool, (B, 1))
    packed[R_PMASK:R_PMASK + BP, 0:KIN] = pmask
    packed[R_FOLDC:R_FOLDC + KIN, 0:C_IN] = foldc
    packed[R_WALL:R_WALL + C_IN, 0:PH] = w_all
    packed[R_SEL:R_SEL + BP, 0:PH] = np.tile(sel, (B, 1))
    packed[R_FOLDH:R_FOLDH + HIDDEN, 0:PH] = foldh
    packed[R_BLOC:R_BLOC + BP, 0:HIDDEN] = np.tile(bloc_fold, (B, 1))
    packed[R_WK:R_WK + HIDDEN, 0:HIDDEN] = np.asarray(raw["w_k"]).T
    packed[R_BK, 0:HIDDEN] = np.asarray(raw["b_k"])
    packed[R_WQ:R_WQ + HIDDEN, 0:HIDDEN] = np.asarray(raw["w_q"]).T
    packed[R_BQ, 0:HIDDEN] = np.asarray(raw["b_q"])
    packed[R_AMSK:R_AMSK + BP, 0:BP] = amask
    packed[R_WFH:R_WFH + C_OUT, 0:HIDDEN] = wfh
    packed[R_SHIFT:R_SHIFT + BCO, 0] = np.tile(np.asarray(raw["be_last"]), B)
    packed[R_WXBD:R_WXBD + BCO, 0:KIN] = wx_bd
    packed[R_PLACE:R_PLACE + PART, 0:KIN] = place

    params = dict(packed=jnp.asarray(packed), ind_rows=jnp.asarray(ind))
    return params, raw


# ----------------------------------- main --------------------------------------
if __name__ == "__main__":
    key = jax.random.PRNGKey(0)
    pkey, xkey = jax.random.split(key)
    params, raw = make_params(pkey)
    x = jax.random.normal(xkey, (B, C_IN, H, W), jnp.float32)   # NCHW like torch

    fwd = jax.jit(part_aware_forward)
    out = jax.block_until_ready(fwd(x, params))

    ref = jax.block_until_ready(reference_forward(x, raw))
    assert out.shape == (B, C_OUT, H, W), out.shape
    assert bool(jnp.all(jnp.isfinite(out)))
    np.testing.assert_allclose(np.asarray(out), np.asarray(ref),
                               rtol=2e-2, atol=1e-2)
    print("KERNEL_OK")
</pallas_src>

<mosaic_0001>
module attributes {stable_mosaic.version = 11 : i64} {
  func.func @part_aware_kernel(%arg0: memref<28x256xbf16, #tpu.memory_space<vmem>>, %arg1: memref<138x256xf32, #tpu.memory_space<vmem>>, %arg2: memref<16x256xf32, #tpu.memory_space<vmem>>) attributes {dimension_semantics = [], scalar_prefetch = 0 : i64, scratch_operands = 0 : i64, tpu.core_type = #tpu.core_type<tc>} {
    %c0 = arith.constant 0 : index
    %c0_0 = arith.constant 0 : index
    %0 = vector.load %arg0[%c0, %c0_0] : memref<28x256xbf16, #tpu.memory_space<vmem>>, vector<28x256xbf16>
    %c0_1 = arith.constant 0 : index
    %c0_2 = arith.constant 0 : index
    %1 = vector.load %arg1[%c0_1, %c0_2] : memref<138x256xf32, #tpu.memory_space<vmem>>, vector<8x256xf32>
    %c8 = arith.constant 8 : index
    %c0_3 = arith.constant 0 : index
    %2 = vector.load %arg1[%c8, %c0_3] : memref<138x256xf32, #tpu.memory_space<vmem>>, vector<8x28xf32>
    %c16 = arith.constant 16 : index
    %c0_4 = arith.constant 0 : index
    %3 = vector.load %arg1[%c16, %c0_4] : memref<138x256xf32, #tpu.memory_space<vmem>>, vector<28x12xf32>
    %c44 = arith.constant 44 : index
    %c0_5 = arith.constant 0 : index
    %4 = vector.load %arg1[%c44, %c0_5] : memref<138x256xf32, #tpu.memory_space<vmem>>, vector<12x16xf32>
    %c56 = arith.constant 56 : index
    %c0_6 = arith.constant 0 : index
    %5 = vector.load %arg1[%c56, %c0_6] : memref<138x256xf32, #tpu.memory_space<vmem>>, vector<8x16xf32>
    %c64 = arith.constant 64 : index
    %c0_7 = arith.constant 0 : index
    %6 = vector.load %arg1[%c64, %c0_7] : memref<138x256xf32, #tpu.memory_space<vmem>>, vector<4x16xf32>
    %c68 = arith.constant 68 : index
    %c0_8 = arith.constant 0 : index
    %7 = vector.load %arg1[%c68, %c0_8] : memref<138x256xf32, #tpu.memory_space<vmem>>, vector<8x4xf32>
    %c76 = arith.constant 76 : index
    %c0_9 = arith.constant 0 : index
    %8 = vector.load %arg1[%c76, %c0_9] : memref<138x256xf32, #tpu.memory_space<vmem>>, vector<4x4xf32>
    %c80 = arith.constant 80 : index
    %c0_10 = arith.constant 0 : index
    %9 = vector.load %arg1[%c80, %c0_10] : memref<138x256xf32, #tpu.memory_space<vmem>>, vector<1x4xf32>
    %c81 = arith.constant 81 : index
    %c0_11 = arith.constant 0 : index
    %10 = vector.load %arg1[%c81, %c0_11] : memref<138x256xf32, #tpu.memory_space<vmem>>, vector<4x4xf32>
    %c85 = arith.constant 85 : index
    %c0_12 = arith.constant 0 : index
    %11 = vector.load %arg1[%c85, %c0_12] : memref<138x256xf32, #tpu.memory_space<vmem>>, vector<1x4xf32>
    %c86 = arith.constant 86 : index
    %c0_13 = arith.constant 0 : index
    %12 = vector.load %arg1[%c86, %c0_13] : memref<138x256xf32, #tpu.memory_space<vmem>>, vector<8x8xf32>
    %c94 = arith.constant 94 : index
    %c0_14 = arith.constant 0 : index
    %13 = vector.load %arg1[%c94, %c0_14] : memref<138x256xf32, #tpu.memory_space<vmem>>, vector<8x4xf32>
    %c102 = arith.constant 102 : index
    %c0_15 = arith.constant 0 : index
    %14 = vector.load %arg1[%c102, %c0_15] : memref<138x256xf32, #tpu.memory_space<vmem>>, vector<16x1xf32>
    %c118 = arith.constant 118 : index
    %c0_16 = arith.constant 0 : index
    %15 = vector.load %arg1[%c118, %c0_16] : memref<138x256xf32, #tpu.memory_space<vmem>>, vector<16x28xf32>
    %c134 = arith.constant 134 : index
    %c0_17 = arith.constant 0 : index
    %16 = vector.load %arg1[%c134, %c0_17] : memref<138x256xf32, #tpu.memory_space<vmem>>, vector<4x28xf32>
    %17 = arith.truncf %1 : vector<8x256xf32> to vector<8x256xbf16>
    %cst = arith.constant dense<0.000000e+00> : vector<8x28xf32>
    %18 = tpu.matmul %17, %0, %cst {dimension_numbers = #tpu.dot_dimension_numbers<[1], [1], [0], [0], [0, 0, 1, 0], [], []>} : vector<8x256xbf16>, vector<28x256xbf16>, vector<8x28xf32> -> vector<8x28xf32>
    %19 = arith.mulf %18, %2 : vector<8x28xf32>
    %cst_18 = arith.constant dense<0.000000e+00> : vector<8x12xf32>
    %20 = tpu.matmul %19, %3, %cst_18 {dimension_numbers = #tpu.dot_dimension_numbers<[1], [0], [0], [1], [0, 0, 1, 1], [], []>} : vector<8x28xf32>, vector<28x12xf32>, vector<8x12xf32> -> vector<8x12xf32>
    %cst_19 = arith.constant 0.000000e+00 : f32
    %21 = vector.broadcast %cst_19 : f32 to vector<8x12xf32>
    %22 = arith.maximumf %20, %21 : vector<8x12xf32>
    %cst_20 = arith.constant dense<0.000000e+00> : vector<8x16xf32>
    %23 = tpu.matmul %22, %4, %cst_20 {dimension_numbers = #tpu.dot_dimension_numbers<[1], [0], [0], [1], [0, 0, 1, 1], [], []>} : vector<8x12xf32>, vector<12x16xf32>, vector<8x16xf32> -> vector<8x16xf32>
    %24 = arith.mulf %23, %5 : vector<8x16xf32>
    %cst_21 = arith.constant dense<0.000000e+00> : vector<8x4xf32>
    %25 = tpu.matmul %24, %6, %cst_21 {dimension_numbers = #tpu.dot_dimension_numbers<[1], [1], [0], [0], [0, 0, 1, 0], [], []>} : vector<8x16xf32>, vector<4x16xf32>, vector<8x4xf32> -> vector<8x4xf32>
    %26 = arith.addf %25, %7 : vector<8x4xf32>
    %cst_22 = arith.constant dense<0.000000e+00> : vector<8x4xf32>
    %27 = tpu.matmul %26, %8, %cst_22 {dimension_numbers = #tpu.dot_dimension_numbers<[1], [0], [0], [1], [0, 0, 1, 1], [], []>} : vector<8x4xf32>, vector<4x4xf32>, vector<8x4xf32> -> vector<8x4xf32>
    %28 = vector.broadcast %9 : vector<1x4xf32> to vector<8x4xf32>
    %29 = arith.addf %27, %28 : vector<8x4xf32>
    %cst_23 = arith.constant dense<0.000000e+00> : vector<8x4xf32>
    %30 = tpu.matmul %26, %10, %cst_23 {dimension_numbers = #tpu.dot_dimension_numbers<[1], [0], [0], [1], [0, 0, 1, 1], [], []>} : vector<8x4xf32>, vector<4x4xf32>, vector<8x4xf32> -> vector<8x4xf32>
    %31 = vector.broadcast %11 : vector<1x4xf32> to vector<8x4xf32>
    %32 = arith.addf %30, %31 : vector<8x4xf32>
    %cst_24 = arith.constant dense<0.000000e+00> : vector<8x8xf32>
    %33 = tpu.matmul %29, %32, %cst_24 {dimension_numbers = #tpu.dot_dimension_numbers<[1], [1], [0], [0], [0, 0, 1, 0], [], []>} : vector<8x4xf32>, vector<8x4xf32>, vector<8x8xf32> -> vector<8x8xf32>
    %34 = arith.addf %33, %12 : vector<8x8xf32>
    %cst_25 = arith.constant dense<0xFF800000> : vector<8xf32>
    %35 = vector.multi_reduction <maximumf>, %34, %cst_25 [1] : vector<8x8xf32> to vector<8xf32>
    %36 = vector.shape_cast %35 : vector<8xf32> to vector<8x1xf32>
    %37 = vector.broadcast %36 : vector<8x1xf32> to vector<8x8xf32>
    %38 = arith.subf %34, %37 : vector<8x8xf32>
    %39 = math.exp %38 : vector<8x8xf32>
    %cst_26 = arith.constant dense<0.000000e+00> : vector<8xf32>
    %40 = vector.multi_reduction <add>, %39, %cst_26 [1] : vector<8x8xf32> to vector<8xf32>
    %41 = vector.shape_cast %40 : vector<8xf32> to vector<8x1xf32>
    %42 = tpu.reciprocal %41 {approx = true} : vector<8x1xf32> -> vector<8x1xf32>
    %43 = vector.broadcast %42 : vector<8x1xf32> to vector<8x8xf32>
    %44 = arith.mulf %39, %43 : vector<8x8xf32>
    %cst_27 = arith.constant dense<0.000000e+00> : vector<8x4xf32>
    %45 = tpu.matmul %44, %26, %cst_27 {dimension_numbers = #tpu.dot_dimension_numbers<[1], [0], [0], [1], [0, 0, 1, 1], [], []>} : vector<8x8xf32>, vector<8x4xf32>, vector<8x4xf32> -> vector<8x4xf32>
    %cst_28 = arith.constant dense<0.000000e+00> : vector<8x8xf32>
    %46 = tpu.matmul %13, %45, %cst_28 {dimension_numbers = #tpu.dot_dimension_numbers<[1], [1], [0], [0], [0, 0, 1, 0], [], []>} : vector<8x4xf32>, vector<8x4xf32>, vector<8x8xf32> -> vector<8x8xf32>
    %47 = vector.extract_strided_slice %46 {offsets = [0, 0], sizes = [8, 4], strides = [1, 1]} : vector<8x8xf32> to vector<8x4xf32>
    %48 = vector.extract_strided_slice %46 {offsets = [0, 4], sizes = [8, 4], strides = [1, 1]} : vector<8x8xf32> to vector<8x4xf32>
    %49 = tpu.concatenate %47, %48 in 0 : vector<8x4xf32>, vector<8x4xf32> -> vector<16x4xf32>
    %50 = vector.broadcast %14 : vector<16x1xf32> to vector<16x4xf32>
    %51 = arith.addf %49, %50 : vector<16x4xf32>
    %cst_29 = arith.constant dense<0.000000e+00> : vector<16x28xf32>
    %52 = tpu.matmul %51, %16, %cst_29 {dimension_numbers = #tpu.dot_dimension_numbers<[1], [0], [0], [1], [0, 0, 1, 1], [], []>} : vector<16x4xf32>, vector<4x28xf32>, vector<16x28xf32> -> vector<16x28xf32>
    %53 = arith.addf %15, %52 : vector<16x28xf32>
    %54 = arith.truncf %53 : vector<16x28xf32> to vector<16x28xbf16>
    %cst_30 = arith.constant dense<0.000000e+00> : vector<16x256xf32>
    %55 = tpu.matmul %54, %0, %cst_30 {dimension_numbers = #tpu.dot_dimension_numbers<[1], [0], [0], [1], [0, 0, 1, 1], [], []>} : vector<16x28xbf16>, vector<28x256xbf16>, vector<16x256xf32> -> vector<16x256xf32>
    %c0_31 = arith.constant 0 : index
    %c0_32 = arith.constant 0 : index
    %56 = vector.load %arg2[%c0_31, %c0_32] : memref<16x256xf32, #tpu.memory_space<vmem>>, vector<16x256xf32>
    tpu.vector_store %arg2[%c0_31, %c0_32], %55 {strides = array<i32>} : memref<16x256xf32, #tpu.memory_space<vmem>>, vector<16x256xf32>,
    return
  }
}

</mosaic_0001>

<llo_original>
// kernel: part_aware_forward.1
$region0: #{part_aware_forward.1}
  #allocation0 [shape = 'u32[]', space=smem, size = 0x4, offset = 0x4, fixed_abs, tag = 'smem constant byte address 0x4 - core index']
  #allocation1 [shape = 'u32[144,128]{1,0:T(1,128)}', space=vmem, size = 0x12000, scoped, tag = 'internal scratch']
  %s0 = inlined_call_operand.vmem [shape: bf16[28,256], index: 0, kind: input, shape index: {}]
  %s1 = inlined_call_operand.vmem [shape: f32[138,256], index: 1, kind: input, shape index: {}]
  %s2 = inlined_call_operand.vmem [shape: f32[16,256], index: 2, kind: output, shape index: {}]
  %s3 = sld [smem:[#allocation0]]
  $region18: #{part_aware_forward.1} parent=0
    _
  %s5 = ssub.s32 1, %s3
  %s6 = scalar_select 0, %s5, %s3
  // Predicated region
  $region2: #{part_aware_forward.1} parent=0 // pred_check
    _
  $region3: #{part_aware_forward.1} parent=0 // pred_check_branch
    %8 = sbr.rel (0) target = $region5
  $region4: #{part_aware_forward.1} parent=0 // pred_region
    _
  $region5: #{part_aware_forward.1} parent=0 // pred_fallthru
    _
  // Predicated region
  $region6: #{part_aware_forward.1} parent=0 // pred_check
    _
  $region7: #{part_aware_forward.1} parent=0 // pred_check_branch
    %10 = sbr.rel (0) target = $region9
  $region8: #{part_aware_forward.1} parent=0 // pred_region
    _
  $region9: #{part_aware_forward.1} parent=0 // pred_fallthru
    _
  %v12 = vld [vmem:[%s0] sm:$0xff]
  %v13 = vld [vmem:[%s0 + $0x8] sm:$0xff]
  %v14 = vld [vmem:[%s0 + $0x10] sm:$0xff]
  %v15 = vld [vmem:[%s0 + $0x18] sm:$0x33]
  %v16 = vld [vmem:[%s1] sm:$0xff]
  %v17 = vld [vmem:[%s1 + $0x8] sm:$0xff]
  %v18 = vld [vmem:[%s1 + $0x10] sm:$0xff]
  %v19 = vld [vmem:[%s1 + $0x20] sm:$0xff]
  %v20 = vld [vmem:[%s1 + $0x30] sm:$0xff]
  %v21 = vld [vmem:[%s1 + $0x40] sm:$0xff]
  %v22 = vld [vmem:[%s1 + $0x50] sm:$0xf]
  %v23 = vld [vmem:[%s1 + $0x50] sm:$0xf0]
  %v24 = vld [vmem:[%s1 + $0x60] sm:$0xff]
  %v25 = vld [vmem:[%s1 + $0x70] sm:$0xff]
  %v26 = vld [vmem:[%s1 + $0x80] sm:$0xf]
  %v27 = vld [vmem:[%s1 + $0x80] sm:$0xf0]
  %v28 = vld [vmem:[%s1 + $0x90] sm:$0xf]
  %v29 = vld [vmem:[%s1 + $0x90] sm:$0xf0]
  %v30 = vld [vmem:[%s1 + $0xa0] ss:$0 sm:$0xff]
  %v31 = vld [vmem:[%s1 + $0xa0] sm:$0x1e]
  %v32 = vld [vmem:[%s1 + $0xa5] ss:$0 sm:$0xff]
  %v33 = vld [vmem:[%s1 + $0xa0] sm:$0xc0]
  %v34 = vld [vmem:[%s1 + $0xb0] sm:$0x3f]
  %v35 = vld [vmem:[%s1 + $0xb0] sm:$0xc0]
  %v36 = vld [vmem:[%s1 + $0xc0] sm:$0x3f]
  %v37 = vld [vmem:[%s1 + $0xc0] sm:$0xc0]
  %v38 = vld [vmem:[%s1 + $0xd0] sm:$0xff]
  %v39 = vld [vmem:[%s1 + $0xe0] sm:$0x3f]
  %v40 = vld [vmem:[%s1 + $0xe0] sm:$0xc0]
  %v41 = vld [vmem:[%s1 + $0xf0] sm:$0xff]
  %v42 = vld [vmem:[%s1 + $0x100] sm:$0x3f]
  %v43 = vld [vmem:[%s1 + $0x100] sm:$0xc0]
  %v44 = vld [vmem:[%s1 + $0x110] sm:$0x3]
  %v45 = vpack.c.bf16 %v16, %v16
  %v46 = vpack.c.bf16 %v17, %v17
  %v51 = vunpack.c.l.b16 %v12
  %v52 = vunpack.c.h.b16 %v12
  %v53 = vunpack.c.l.b16 %v13
  %v54 = vunpack.c.h.b16 %v13
  %v55 = vunpack.c.l.b16 %v14
  %v56 = vunpack.c.h.b16 %v14
  %v57 = vunpack.c.l.b16 %v15
  %v58 = vunpack.c.h.b16 %v15
  %v59 = vpack.c.b16 %v53, %v51
  %v60 = vpack.c.b16 %v54, %v52
  %v61 = vpack.c.b16 %v57, %v55
  %v62 = vpack.c.b16 %v58, %v56
  %67 = vmatprep.subr.bf16.mxu0 0
  %68 = vmatpush1.bf16.xpose.msra.mxu0 0
  %69 = vmatprep.subr.bf16.mxu0 0
  %70 = vmatpush1.bf16.xpose.msra.mxu0 0
  %71 = vmatprep.subr.bf16.mxu0 0
  %72 = vmatpush1.bf16.xpose.msra.mxu0 0
  %73 = vmatprep.subr.bf16.mxu0 0
  %74 = vmatpush1.bf16.xpose.msra.mxu0 0
  %75 = vmatprep.subr.bf16.mxu0 0
  %76 = vmatpush1.bf16.xpose.msra.mxu0 0
  %77 = vmatprep.subr.bf16.mxu0 0
  %78 = vmatpush1.bf16.xpose.msra.mxu0 0
  %79 = vmatprep.subr.bf16.mxu0 %v62
  %80 = vmatpush1.bf16.xpose.msra.mxu0 %v61
  %81 = vmatprep.subr.bf16.mxu0 %v60
  %82 = vmatpush1.bf16.xpose.msra.mxu0 %v59
  %83 = vmatprep.subr.bf16.mxu0 0
  %84 = vmatpush2.bf16.xpose.msra.mxu0 0
  %85 = vmatprep.subr.bf16.mxu0 0
  %86 = vmatpush2.bf16.xpose.msra.mxu0 0
  %87 = vmatprep.subr.bf16.mxu0 0
  %88 = vmatpush2.bf16.xpose.msra.mxu0 0
  %89 = vmatprep.subr.bf16.mxu0 0
  %90 = vmatpush2.bf16.xpose.msra.mxu0 0
  %91 = vmatprep.subr.bf16.mxu0 0
  %92 = vmatpush2.bf16.xpose.msra.mxu0 0
  %93 = vmatprep.subr.bf16.mxu0 0
  %94 = vmatpush2.bf16.xpose.msra.mxu0 0
  %95 = vmatprep.subr.bf16.mxu0 0
  %96 = vmatpush2.bf16.xpose.msra.mxu0 0
  %97 = vmatprep.subr.bf16.mxu0 0
  %98 = vmatpush2.bf16.xpose.msra.mxu0 0
  %99 = vmatprep.mubr.bf16.mxu0 %v46
  %100 = vmatmul.mubr.bf16.gmra.mxu0 %v45
  %v101 = vpop.f32.mrf.mxu0
  %v102 = vadd.f32 0.0, %v101
  %v103 = vpop.f32.mrf.mxu0
  %v104 = vpop.f32.mrf.mxu0
  %v105 = vpop.f32.mrf.mxu0
  %106 = vdwg.mxu0
  %v107 = vmul.f32 %v102, %v18
  %vm108 = vcmask 228352
  %v110 = vsel %vm108, %v107, 0
  %vm112 = vcmask 1043456
  %v114 = vsel %vm112, %v22, 0
  %116 = vmatprep.subr.mxu0 0.0
  %117 = vmatpush1.msra.mxu0 0.0
  %118 = vmatprep.subr.mxu0 0.0
  %119 = vmatpush1.msra.mxu0 0.0
  %120 = vmatprep.subr.mxu0 0.0
  %121 = vmatpush1.msra.mxu0 0.0
  %122 = vmatprep.subr.mxu0 0.0
  %123 = vmatpush1.msra.mxu0 0.0
  %124 = vmatprep.subr.mxu0 0.0
  %125 = vmatpush1.msra.mxu0 0.0
  %126 = vmatprep.subr.mxu0 0.0
  %127 = vmatpush1.msra.mxu0 0.0
  %128 = vmatprep.subr.mxu0 0.0
  %129 = vmatpush1.msra.mxu0 0.0
  %130 = vmatprep.subr.mxu0 0.0
  %131 = vmatpush1.msra.mxu0 0.0
  %132 = vmatprep.subr.mxu0 0.0
  %133 = vmatpush1.msra.mxu0 0.0
  %134 = vmatprep.subr.mxu0 0.0
  %135 = vmatpush1.msra.mxu0 0.0
  %136 = vmatprep.subr.mxu0 0.0
  %137 = vmatpush1.msra.mxu0 0.0
  %138 = vmatprep.subr.mxu0 0.0
  %139 = vmatpush1.msra.mxu0 0.0
  %140 = vmatprep.subr.mxu0 0.0
  %141 = vmatpush1.msra.mxu0 %v114
  %142 = vmatprep.subr.mxu0 0.0
  %143 = vmatpush1.msra.mxu0 %v21
  %144 = vmatprep.subr.mxu0 0.0
  %145 = vmatpush1.msra.mxu0 %v20
  %146 = vmatprep.subr.mxu0 0.0
  %147 = vmatpush1.msra.mxu0 %v19
  %148 = vmatprep.subr.mxu0 0.0
  %149 = vmatpush2.msra.mxu0 0.0
  %150 = vmatprep.subr.mxu0 0.0
  %151 = vmatpush2.msra.mxu0 0.0
  %152 = vmatprep.subr.mxu0 0.0
  %153 = vmatpush2.msra.mxu0 0.0
  %154 = vmatprep.subr.mxu0 0.0
  %155 = vmatpush2.msra.mxu0 0.0
  %156 = vmatprep.subr.mxu0 0.0
  %157 = vmatpush2.msra.mxu0 0.0
  %158 = vmatprep.subr.mxu0 0.0
  %159 = vmatpush2.msra.mxu0 0.0
  %160 = vmatprep.subr.mxu0 0.0
  %161 = vmatpush2.msra.mxu0 0.0
  %162 = vmatprep.subr.mxu0 0.0
  %163 = vmatpush2.msra.mxu0 0.0
  %164 = vmatprep.subr.mxu0 0.0
  %165 = vmatpush2.msra.mxu0 0.0
  %166 = vmatprep.subr.mxu0 0.0
  %167 = vmatpush2.msra.mxu0 0.0
  %168 = vmatprep.subr.mxu0 0.0
  %169 = vmatpush2.msra.mxu0 0.0
  %170 = vmatprep.subr.mxu0 0.0
  %171 = vmatpush2.msra.mxu0 0.0
  %172 = vmatprep.subr.mxu0 0.0
  %173 = vmatpush2.msra.mxu0 0.0
  %174 = vmatprep.subr.mxu0 0.0
  %175 = vmatpush2.msra.mxu0 0.0
  %176 = vmatprep.subr.mxu0 0.0
  %177 = vmatpush2.msra.mxu0 0.0
  %178 = vmatprep.subr.mxu0 0.0
  %179 = vmatpush2.msra.mxu0 0.0
  %180 = vmatprep.mubr.f32.mxu0 0.0
  %181 = vmatmul.mubr.f32.gmra.mxu0 %v110
  %v182 = vpop.f32.mrf.mxu0
  %v183 = vadd.f32 0.0, %v182
  %v184 = vpop.f32.mrf.mxu0
  %185 = vdwg.mxu0
  %v186 = vmax.f32 %v183, 0.0
  %v189 = vrot.slane %v23, 4
  %v190 = vrot.slane %v24, 4
  %v191 = vsel %vm112, %v189, %v190
  %vm193 = vcmask 97280
  %v195 = vsel %vm193, %v186, 0
  %v197 = vsel %vm112, %v190, 0
  %199 = vmatprep.subr.mxu0 0.0
  %200 = vmatpush1.msra.mxu0 0.0
  %201 = vmatprep.subr.mxu0 0.0
  %202 = vmatpush1.msra.mxu0 0.0
  %203 = vmatprep.subr.mxu0 0.0
  %204 = vmatpush1.msra.mxu0 0.0
  %205 = vmatprep.subr.mxu0 0.0
  %206 = vmatpush1.msra.mxu0 0.0
  %207 = vmatprep.subr.mxu0 0.0
  %208 = vmatpush1.msra.mxu0 0.0
  %209 = vmatprep.subr.mxu0 0.0
  %210 = vmatpush1.msra.mxu0 0.0
  %211 = vmatprep.subr.mxu0 0.0
  %212 = vmatpush1.msra.mxu0 0.0
  %213 = vmatprep.subr.mxu0 0.0
  %214 = vmatpush1.msra.mxu0 0.0
  %215 = vmatprep.subr.mxu0 0.0
  %216 = vmatpush1.msra.mxu0 0.0
  %217 = vmatprep.subr.mxu0 0.0
  %218 = vmatpush1.msra.mxu0 0.0
  %219 = vmatprep.subr.mxu0 0.0
  %220 = vmatpush1.msra.mxu0 0.0
  %221 = vmatprep.subr.mxu0 0.0
  %222 = vmatpush1.msra.mxu0 0.0
  %223 = vmatprep.subr.mxu0 0.0
  %224 = vmatpush1.msra.mxu0 0.0
  %225 = vmatprep.subr.mxu0 0.0
  %226 = vmatpush1.msra.mxu0 0.0
  %227 = vmatprep.subr.mxu0 0.0
  %228 = vmatpush1.msra.mxu0 %v197
  %229 = vmatprep.subr.mxu0 0.0
  %230 = vmatpush1.msra.mxu0 %v191
  %231 = vmatprep.subr.mxu0 0.0
  %232 = vmatpush2.msra.mxu0 0.0
  %233 = vmatprep.subr.mxu0 0.0
  %234 = vmatpush2.msra.mxu0 0.0
  %235 = vmatprep.subr.mxu0 0.0
  %236 = vmatpush2.msra.mxu0 0.0
  %237 = vmatprep.subr.mxu0 0.0
  %238 = vmatpush2.msra.mxu0 0.0
  %239 = vmatprep.subr.mxu0 0.0
  %240 = vmatpush2.msra.mxu0 0.0
  %241 = vmatprep.subr.mxu0 0.0
  %242 = vmatpush2.msra.mxu0 0.0
  %243 = vmatprep.subr.mxu0 0.0
  %244 = vmatpush2.msra.mxu0 0.0
  %245 = vmatprep.subr.mxu0 0.0
  %246 = vmatpush2.msra.mxu0 0.0
  %247 = vmatprep.subr.mxu0 0.0
  %248 = vmatpush2.msra.mxu0 0.0
  %249 = vmatprep.subr.mxu0 0.0
  %250 = vmatpush2.msra.mxu0 0.0
  %251 = vmatprep.subr.mxu0 0.0
  %252 = vmatpush2.msra.mxu0 0.0
  %253 = vmatprep.subr.mxu0 0.0
  %254 = vmatpush2.msra.mxu0 0.0
  %255 = vmatprep.subr.mxu0 0.0
  %256 = vmatpush2.msra.mxu0 0.0
  %257 = vmatprep.subr.mxu0 0.0
  %258 = vmatpush2.msra.mxu0 0.0
  %259 = vmatprep.subr.mxu0 0.0
  %260 = vmatpush2.msra.mxu0 0.0
  %261 = vmatprep.subr.mxu0 0.0
  %262 = vmatpush2.msra.mxu0 0.0
  %263 = vmatprep.mubr.f32.mxu0 0.0
  %264 = vmatmul.mubr.f32.gmra.mxu0 %v195
  %v265 = vpop.f32.mrf.mxu0
  %v266 = vadd.f32 0.0, %v265
  %v267 = vpop.f32.mrf.mxu0
  %268 = vdwg.mxu0
  %v269 = vmul.f32 %v266, %v25
  %v272 = vrot.slane %v27, 4
  %v273 = vrot.slane %v28, 4
  %v274 = vsel %vm112, %v272, %v273
  %vm276 = vcmask 130048
  %v278 = vsel %vm276, %v269, 0
  %v281 = vsel %vm276, %v26, 0
  %283 = vmatprep.subr.mxu0 0.0
  %284 = vmatpush1.xpose.msra.mxu0 0.0
  %285 = vmatprep.subr.mxu0 0.0
  %286 = vmatpush1.xpose.msra.mxu0 0.0
  %287 = vmatprep.subr.mxu0 0.0
  %288 = vmatpush1.xpose.msra.mxu0 0.0
  %289 = vmatprep.subr.mxu0 0.0
  %290 = vmatpush1.xpose.msra.mxu0 0.0
  %291 = vmatprep.subr.mxu0 0.0
  %292 = vmatpush1.xpose.msra.mxu0 0.0
  %293 = vmatprep.subr.mxu0 0.0
  %294 = vmatpush1.xpose.msra.mxu0 0.0
  %295 = vmatprep.subr.mxu0 0.0
  %296 = vmatpush1.xpose.msra.mxu0 0.0
  %297 = vmatprep.subr.mxu0 0.0
  %298 = vmatpush1.xpose.msra.mxu0 0.0
  %299 = vmatprep.subr.mxu0 0.0
  %300 = vmatpush1.xpose.msra.mxu0 0.0
  %301 = vmatprep.subr.mxu0 0.0
  %302 = vmatpush1.xpose.msra.mxu0 0.0
  %303 = vmatprep.subr.mxu0 0.0
  %304 = vmatpush1.xpose.msra.mxu0 0.0
  %305 = vmatprep.subr.mxu0 0.0
  %306 = vmatpush1.xpose.msra.mxu0 0.0
  %307 = vmatprep.subr.mxu0 0.0
  %308 = vmatpush1.xpose.msra.mxu0 0.0
  %309 = vmatprep.subr.mxu0 0.0
  %310 = vmatpush1.xpose.msra.mxu0 0.0
  %311 = vmatprep.subr.mxu0 0.0
  %312 = vmatpush1.xpose.msra.mxu0 0.0
  %313 = vmatprep.subr.mxu0 0.0
  %314 = vmatpush1.xpose.msra.mxu0 %v281
  %315 = vmatprep.subr.mxu0 0.0
  %316 = vmatpush2.xpose.msra.mxu0 0.0
  %317 = vmatprep.subr.mxu0 0.0
  %318 = vmatpush2.xpose.msra.mxu0 0.0
  %319 = vmatprep.subr.mxu0 0.0
  %320 = vmatpush2.xpose.msra.mxu0 0.0
  %321 = vmatprep.subr.mxu0 0.0
  %322 = vmatpush2.xpose.msra.mxu0 0.0
  %323 = vmatprep.subr.mxu0 0.0
  %324 = vmatpush2.xpose.msra.mxu0 0.0
  %325 = vmatprep.subr.mxu0 0.0
  %326 = vmatpush2.xpose.msra.mxu0 0.0
  %327 = vmatprep.subr.mxu0 0.0
  %328 = vmatpush2.xpose.msra.mxu0 0.0
  %329 = vmatprep.subr.mxu0 0.0
  %330 = vmatpush2.xpose.msra.mxu0 0.0
  %331 = vmatprep.subr.mxu0 0.0
  %332 = vmatpush2.xpose.msra.mxu0 0.0
  %333 = vmatprep.subr.mxu0 0.0
  %334 = vmatpush2.xpose.msra.mxu0 0.0
  %335 = vmatprep.subr.mxu0 0.0
  %336 = vmatpush2.xpose.msra.mxu0 0.0
  %337 = vmatprep.subr.mxu0 0.0
  %338 = vmatpush2.xpose.msra.mxu0 0.0
  %339 = vmatprep.subr.mxu0 0.0
  %340 = vmatpush2.xpose.msra.mxu0 0.0
  %341 = vmatprep.subr.mxu0 0.0
  %342 = vmatpush2.xpose.msra.mxu0 0.0
  %343 = vmatprep.subr.mxu0 0.0
  %344 = vmatpush2.xpose.msra.mxu0 0.0
  %345 = vmatprep.subr.mxu0 0.0
  %346 = vmatpush2.xpose.msra.mxu0 0.0
  %347 = vmatprep.mubr.f32.mxu0 0.0
  %348 = vmatmul.mubr.f32.gmra.mxu0 %v278
  %v349 = vpop.f32.mrf.mxu0
  %v350 = vadd.f32 %v274, %v349
  %v351 = vpop.f32.mrf.mxu0
  %352 = vdwg.mxu0
  %v354 = vrot.slane %v29, 4
  %vm355 = vcmask 31744
  %v357 = vsel %vm355, %v350, 0
  %v359 = vsel %vm112, %v354, 0
  %361 = vmatprep.subr.mxu0 0.0
  %362 = vmatpush1.msra.mxu0 0.0
  %363 = vmatprep.subr.mxu0 0.0
  %364 = vmatpush1.msra.mxu0 0.0
  %365 = vmatprep.subr.mxu0 0.0
  %366 = vmatpush1.msra.mxu0 0.0
  %367 = vmatprep.subr.mxu0 0.0
  %368 = vmatpush1.msra.mxu0 0.0
  %369 = vmatprep.subr.mxu0 0.0
  %370 = vmatpush1.msra.mxu0 0.0
  %371 = vmatprep.subr.mxu0 0.0
  %372 = vmatpush1.msra.mxu0 0.0
  %373 = vmatprep.subr.mxu0 0.0
  %374 = vmatpush1.msra.mxu0 0.0
  %375 = vmatprep.subr.mxu0 0.0
  %376 = vmatpush1.msra.mxu0 0.0
  %377 = vmatprep.subr.mxu0 0.0
  %378 = vmatpush1.msra.mxu0 0.0
  %379 = vmatprep.subr.mxu0 0.0
  %380 = vmatpush1.msra.mxu0 0.0
  %381 = vmatprep.subr.mxu0 0.0
  %382 = vmatpush1.msra.mxu0 0.0
  %383 = vmatprep.subr.mxu0 0.0
  %384 = vmatpush1.msra.mxu0 0.0
  %385 = vmatprep.subr.mxu0 0.0
  %386 = vmatpush1.msra.mxu0 0.0
  %387 = vmatprep.subr.mxu0 0.0
  %388 = vmatpush1.msra.mxu0 0.0
  %389 = vmatprep.subr.mxu0 0.0
  %390 = vmatpush1.msra.mxu0 0.0
  %391 = vmatprep.subr.mxu0 0.0
  %392 = vmatpush1.msra.mxu0 %v359
  %393 = vmatprep.subr.mxu0 0.0
  %394 = vmatpush2.msra.mxu0 0.0
  %395 = vmatprep.subr.mxu0 0.0
  %396 = vmatpush2.msra.mxu0 0.0
  %397 = vmatprep.subr.mxu0 0.0
  %398 = vmatpush2.msra.mxu0 0.0
  %399 = vmatprep.subr.mxu0 0.0
  %400 = vmatpush2.msra.mxu0 0.0
  %401 = vmatprep.subr.mxu0 0.0
  %402 = vmatpush2.msra.mxu0 0.0
  %403 = vmatprep.subr.mxu0 0.0
  %404 = vmatpush2.msra.mxu0 0.0
  %405 = vmatprep.subr.mxu0 0.0
  %406 = vmatpush2.msra.mxu0 0.0
  %407 = vmatprep.subr.mxu0 0.0
  %408 = vmatpush2.msra.mxu0 0.0
  %409 = vmatprep.subr.mxu0 0.0
  %410 = vmatpush2.msra.mxu0 0.0
  %411 = vmatprep.subr.mxu0 0.0
  %412 = vmatpush2.msra.mxu0 0.0
  %413 = vmatprep.subr.mxu0 0.0
  %414 = vmatpush2.msra.mxu0 0.0
  %415 = vmatprep.subr.mxu0 0.0
  %416 = vmatpush2.msra.mxu0 0.0
  %417 = vmatprep.subr.mxu0 0.0
  %418 = vmatpush2.msra.mxu0 0.0
  %419 = vmatprep.subr.mxu0 0.0
  %420 = vmatpush2.msra.mxu0 0.0
  %421 = vmatprep.subr.mxu0 0.0
  %422 = vmatpush2.msra.mxu0 0.0
  %423 = vmatprep.subr.mxu0 0.0
  %424 = vmatpush2.msra.mxu0 0.0
  %425 = vmatprep.mubr.f32.mxu0 0.0
  %426 = vmatmul.mubr.f32.gmra.mxu0 %v357
  %v427 = vpop.f32.mrf.mxu0
  %v428 = vadd.f32 %v30, %v427
  %v429 = vpop.f32.mrf.mxu0
  %430 = vdwg.mxu0
  %v432 = vrot.slane %v31, 1
  %v433 = vsel %vm112, %v432, 0
  %435 = vmatprep.subr.mxu0 0.0
  %436 = vmatpush1.msra.mxu0 0.0
  %437 = vmatprep.subr.mxu0 0.0
  %438 = vmatpush1.msra.mxu0 0.0
  %439 = vmatprep.subr.mxu0 0.0
  %440 = vmatpush1.msra.mxu0 0.0
  %441 = vmatprep.subr.mxu0 0.0
  %442 = vmatpush1.msra.mxu0 0.0
  %443 = vmatprep.subr.mxu0 0.0
  %444 = vmatpush1.msra.mxu0 0.0
  %445 = vmatprep.subr.mxu0 0.0
  %446 = vmatpush1.msra.mxu0 0.0
  %447 = vmatprep.subr.mxu0 0.0
  %448 = vmatpush1.msra.mxu0 0.0
  %449 = vmatprep.subr.mxu0 0.0
  %450 = vmatpush1.msra.mxu0 0.0
  %451 = vmatprep.subr.mxu0 0.0
  %452 = vmatpush1.msra.mxu0 0.0
  %453 = vmatprep.subr.mxu0 0.0
  %454 = vmatpush1.msra.mxu0 0.0
  %455 = vmatprep.subr.mxu0 0.0
  %456 = vmatpush1.msra.mxu0 0.0
  %457 = vmatprep.subr.mxu0 0.0
  %458 = vmatpush1.msra.mxu0 0.0
  %459 = vmatprep.subr.mxu0 0.0
  %460 = vmatpush1.msra.mxu0 0.0
  %461 = vmatprep.subr.mxu0 0.0
  %462 = vmatpush1.msra.mxu0 0.0
  %463 = vmatprep.subr.mxu0 0.0
  %464 = vmatpush1.msra.mxu0 0.0
  %465 = vmatprep.subr.mxu0 0.0
  %466 = vmatpush1.msra.mxu0 %v433
  %467 = vmatprep.subr.mxu0 0.0
  %468 = vmatpush2.msra.mxu0 0.0
  %469 = vmatprep.subr.mxu0 0.0
  %470 = vmatpush2.msra.mxu0 0.0
  %471 = vmatprep.subr.mxu0 0.0
  %472 = vmatpush2.msra.mxu0 0.0
  %473 = vmatprep.subr.mxu0 0.0
  %474 = vmatpush2.msra.mxu0 0.0
  %475 = vmatprep.subr.mxu0 0.0
  %476 = vmatpush2.msra.mxu0 0.0
  %477 = vmatprep.subr.mxu0 0.0
  %478 = vmatpush2.msra.mxu0 0.0
  %479 = vmatprep.subr.mxu0 0.0
  %480 = vmatpush2.msra.mxu0 0.0
  %481 = vmatprep.subr.mxu0 0.0
  %482 = vmatpush2.msra.mxu0 0.0
  %483 = vmatprep.subr.mxu0 0.0
  %484 = vmatpush2.msra.mxu0 0.0
  %485 = vmatprep.subr.mxu0 0.0
  %486 = vmatpush2.msra.mxu0 0.0
  %487 = vmatprep.subr.mxu0 0.0
  %488 = vmatpush2.msra.mxu0 0.0
  %489 = vmatprep.subr.mxu0 0.0
  %490 = vmatpush2.msra.mxu0 0.0
  %491 = vmatprep.subr.mxu0 0.0
  %492 = vmatpush2.msra.mxu0 0.0
  %493 = vmatprep.subr.mxu0 0.0
  %494 = vmatpush2.msra.mxu0 0.0
  %495 = vmatprep.subr.mxu0 0.0
  %496 = vmatpush2.msra.mxu0 0.0
  %497 = vmatprep.subr.mxu0 0.0
  %498 = vmatpush2.msra.mxu0 0.0
  %499 = vmatprep.mubr.f32.mxu0 0.0
  %500 = vmatmul.mubr.f32.gmra.mxu0 %v357
  %v501 = vpop.f32.mrf.mxu0
  %v502 = vadd.f32 %v32, %v501
  %v503 = vpop.f32.mrf.mxu0
  %504 = vdwg.mxu0
  %vm507 = vcmask 1041408
  %v508 = vrot.slane %v33, 6
  %v509 = vrot.slane %v34, 6
  %v510 = vsel %vm507, %v508, %v509
  %v513 = vsel %vm355, %v428, 0
  %v516 = vsel %vm355, %v502, 0
  %518 = vmatprep.subr.mxu0 0.0
  %519 = vmatpush1.xpose.msra.mxu0 0.0
  %520 = vmatprep.subr.mxu0 0.0
  %521 = vmatpush1.xpose.msra.mxu0 0.0
  %522 = vmatprep.subr.mxu0 0.0
  %523 = vmatpush1.xpose.msra.mxu0 0.0
  %524 = vmatprep.subr.mxu0 0.0
  %525 = vmatpush1.xpose.msra.mxu0 0.0
  %526 = vmatprep.subr.mxu0 0.0
  %527 = vmatpush1.xpose.msra.mxu0 0.0
  %528 = vmatprep.subr.mxu0 0.0
  %529 = vmatpush1.xpose.msra.mxu0 0.0
  %530 = vmatprep.subr.mxu0 0.0
  %531 = vmatpush1.xpose.msra.mxu0 0.0
  %532 = vmatprep.subr.mxu0 0.0
  %533 = vmatpush1.xpose.msra.mxu0 0.0
  %534 = vmatprep.subr.mxu0 0.0
  %535 = vmatpush1.xpose.msra.mxu0 0.0
  %536 = vmatprep.subr.mxu0 0.0
  %537 = vmatpush1.xpose.msra.mxu0 0.0
  %538 = vmatprep.subr.mxu0 0.0
  %539 = vmatpush1.xpose.msra.mxu0 0.0
  %540 = vmatprep.subr.mxu0 0.0
  %541 = vmatpush1.xpose.msra.mxu0 0.0
  %542 = vmatprep.subr.mxu0 0.0
  %543 = vmatpush1.xpose.msra.mxu0 0.0
  %544 = vmatprep.subr.mxu0 0.0
  %545 = vmatpush1.xpose.msra.mxu0 0.0
  %546 = vmatprep.subr.mxu0 0.0
  %547 = vmatpush1.xpose.msra.mxu0 0.0
  %548 = vmatprep.subr.mxu0 0.0
  %549 = vmatpush1.xpose.msra.mxu0 %v516
  %550 = vmatprep.subr.mxu0 0.0
  %551 = vmatpush2.xpose.msra.mxu0 0.0
  %552 = vmatprep.subr.mxu0 0.0
  %553 = vmatpush2.xpose.msra.mxu0 0.0
  %554 = vmatprep.subr.mxu0 0.0
  %555 = vmatpush2.xpose.msra.mxu0 0.0
  %556 = vmatprep.subr.mxu0 0.0
  %557 = vmatpush2.xpose.msra.mxu0 0.0
  %558 = vmatprep.subr.mxu0 0.0
  %559 = vmatpush2.xpose.msra.mxu0 0.0
  %560 = vmatprep.subr.mxu0 0.0
  %561 = vmatpush2.xpose.msra.mxu0 0.0
  %562 = vmatprep.subr.mxu0 0.0
  %563 = vmatpush2.xpose.msra.mxu0 0.0
  %564 = vmatprep.subr.mxu0 0.0
  %565 = vmatpush2.xpose.msra.mxu0 0.0
  %566 = vmatprep.subr.mxu0 0.0
  %567 = vmatpush2.xpose.msra.mxu0 0.0
  %568 = vmatprep.subr.mxu0 0.0
  %569 = vmatpush2.xpose.msra.mxu0 0.0
  %570 = vmatprep.subr.mxu0 0.0
  %571 = vmatpush2.xpose.msra.mxu0 0.0
  %572 = vmatprep.subr.mxu0 0.0
  %573 = vmatpush2.xpose.msra.mxu0 0.0
  %574 = vmatprep.subr.mxu0 0.0
  %575 = vmatpush2.xpose.msra.mxu0 0.0
  %576 = vmatprep.subr.mxu0 0.0
  %577 = vmatpush2.xpose.msra.mxu0 0.0
  %578 = vmatprep.subr.mxu0 0.0
  %579 = vmatpush2.xpose.msra.mxu0 0.0
  %580 = vmatprep.subr.mxu0 0.0
  %581 = vmatpush2.xpose.msra.mxu0 0.0
  %582 = vmatprep.mubr.f32.mxu0 0.0
  %583 = vmatmul.mubr.f32.gmra.mxu0 %v513
  %v584 = vpop.f32.mrf.mxu0
  %v585 = vadd.f32 %v510, %v584
  %v586 = vpop.f32.mrf.mxu0
  %587 = vdwg.mxu0
  %vm588 = vcmask 64512
  %v589 = vsel %vm588, %v585, -inf
  %590 = vmax.xlane.f32.xlu0 %v589
  %v591 = vpop.xlane.xlu0 %590
  %v592 = vsub.f32 %v585, %v591
  %v593 = vmul.f32 %v592, 1.442695
  %v594 = vpow.pop %v593
  %v595 = vsel %vm588, %v594, 0.0
  %596 = vadd.xlane.f32.xlu0 %v595
  %v597 = vpop.xlane.xlu0 %596
  %v598 = vrcp.pop %v597
  %v599 = vmul.f32 %v594, %v598
  %v601 = vsel %vm588, %v599, 0
  %603 = vmatprep.subr.mxu0 0.0
  %604 = vmatpush1.msra.mxu0 0.0
  %605 = vmatprep.subr.mxu0 0.0
  %606 = vmatpush1.msra.mxu0 0.0
  %607 = vmatprep.subr.mxu0 0.0
  %608 = vmatpush1.msra.mxu0 0.0
  %609 = vmatprep.subr.mxu0 0.0
  %610 = vmatpush1.msra.mxu0 0.0
  %611 = vmatprep.subr.mxu0 0.0
  %612 = vmatpush1.msra.mxu0 0.0
  %613 = vmatprep.subr.mxu0 0.0
  %614 = vmatpush1.msra.mxu0 0.0
  %615 = vmatprep.subr.mxu0 0.0
  %616 = vmatpush1.msra.mxu0 0.0
  %617 = vmatprep.subr.mxu0 0.0
  %618 = vmatpush1.msra.mxu0 0.0
  %619 = vmatprep.subr.mxu0 0.0
  %620 = vmatpush1.msra.mxu0 0.0
  %621 = vmatprep.subr.mxu0 0.0
  %622 = vmatpush1.msra.mxu0 0.0
  %623 = vmatprep.subr.mxu0 0.0
  %624 = vmatpush1.msra.mxu0 0.0
  %625 = vmatprep.subr.mxu0 0.0
  %626 = vmatpush1.msra.mxu0 0.0
  %627 = vmatprep.subr.mxu0 0.0
  %628 = vmatpush1.msra.mxu0 0.0
  %629 = vmatprep.subr.mxu0 0.0
  %630 = vmatpush1.msra.mxu0 0.0
  %631 = vmatprep.subr.mxu0 0.0
  %632 = vmatpush1.msra.mxu0 0.0
  %633 = vmatprep.subr.mxu0 0.0
  %634 = vmatpush1.msra.mxu0 %v350
  %635 = vmatprep.subr.mxu0 0.0
  %636 = vmatpush2.msra.mxu0 0.0
  %637 = vmatprep.subr.mxu0 0.0
  %638 = vmatpush2.msra.mxu0 0.0
  %639 = vmatprep.subr.mxu0 0.0
  %640 = vmatpush2.msra.mxu0 0.0
  %641 = vmatprep.subr.mxu0 0.0
  %642 = vmatpush2.msra.mxu0 0.0
  %643 = vmatprep.subr.mxu0 0.0
  %644 = vmatpush2.msra.mxu0 0.0
  %645 = vmatprep.subr.mxu0 0.0
  %646 = vmatpush2.msra.mxu0 0.0
  %647 = vmatprep.subr.mxu0 0.0
  %648 = vmatpush2.msra.mxu0 0.0
  %649 = vmatprep.subr.mxu0 0.0
  %650 = vmatpush2.msra.mxu0 0.0
  %651 = vmatprep.subr.mxu0 0.0
  %652 = vmatpush2.msra.mxu0 0.0
  %653 = vmatprep.subr.mxu0 0.0
  %654 = vmatpush2.msra.mxu0 0.0
  %655 = vmatprep.subr.mxu0 0.0
  %656 = vmatpush2.msra.mxu0 0.0
  %657 = vmatprep.subr.mxu0 0.0
  %658 = vmatpush2.msra.mxu0 0.0
  %659 = vmatprep.subr.mxu0 0.0
  %660 = vmatpush2.msra.mxu0 0.0
  %661 = vmatprep.subr.mxu0 0.0
  %662 = vmatpush2.msra.mxu0 0.0
  %663 = vmatprep.subr.mxu0 0.0
  %664 = vmatpush2.msra.mxu0 0.0
  %665 = vmatprep.subr.mxu0 0.0
  %666 = vmatpush2.msra.mxu0 0.0
  %667 = vmatprep.mubr.f32.mxu0 0.0
  %668 = vmatmul.mubr.f32.gmra.mxu0 %v601
  %v669 = vpop.f32.mrf.mxu0
  %v670 = vadd.f32 0.0, %v669
  %v671 = vpop.f32.mrf.mxu0
  %672 = vdwg.mxu0
  %v675 = vrot.slane %v35, 6
  %v676 = vrot.slane %v36, 6
  %v677 = vsel %vm507, %v675, %v676
  %v678 = vsel %vm355, %v677, 0
  %v681 = vsel %vm355, %v670, 0
  %683 = vmatprep.subr.mxu0 0.0
  %684 = vmatpush1.xpose.msra.mxu0 0.0
  %685 = vmatprep.subr.mxu0 0.0
  %686 = vmatpush1.xpose.msra.mxu0 0.0
  %687 = vmatprep.subr.mxu0 0.0
  %688 = vmatpush1.xpose.msra.mxu0 0.0
  %689 = vmatprep.subr.mxu0 0.0
  %690 = vmatpush1.xpose.msra.mxu0 0.0
  %691 = vmatprep.subr.mxu0 0.0
  %692 = vmatpush1.xpose.msra.mxu0 0.0
  %693 = vmatprep.subr.mxu0 0.0
  %694 = vmatpush1.xpose.msra.mxu0 0.0
  %695 = vmatprep.subr.mxu0 0.0
  %696 = vmatpush1.xpose.msra.mxu0 0.0
  %697 = vmatprep.subr.mxu0 0.0
  %698 = vmatpush1.xpose.msra.mxu0 0.0
  %699 = vmatprep.subr.mxu0 0.0
  %700 = vmatpush1.xpose.msra.mxu0 0.0
  %701 = vmatprep.subr.mxu0 0.0
  %702 = vmatpush1.xpose.msra.mxu0 0.0
  %703 = vmatprep.subr.mxu0 0.0
  %704 = vmatpush1.xpose.msra.mxu0 0.0
  %705 = vmatprep.subr.mxu0 0.0
  %706 = vmatpush1.xpose.msra.mxu0 0.0
  %707 = vmatprep.subr.mxu0 0.0
  %708 = vmatpush1.xpose.msra.mxu0 0.0
  %709 = vmatprep.subr.mxu0 0.0
  %710 = vmatpush1.xpose.msra.mxu0 0.0
  %711 = vmatprep.subr.mxu0 0.0
  %712 = vmatpush1.xpose.msra.mxu0 0.0
  %713 = vmatprep.subr.mxu0 0.0
  %714 = vmatpush1.xpose.msra.mxu0 %v681
  %715 = vmatprep.subr.mxu0 0.0
  %716 = vmatpush2.xpose.msra.mxu0 0.0
  %717 = vmatprep.subr.mxu0 0.0
  %718 = vmatpush2.xpose.msra.mxu0 0.0
  %719 = vmatprep.subr.mxu0 0.0
  %720 = vmatpush2.xpose.msra.mxu0 0.0
  %721 = vmatprep.subr.mxu0 0.0
  %722 = vmatpush2.xpose.msra.mxu0 0.0
  %723 = vmatprep.subr.mxu0 0.0
  %724 = vmatpush2.xpose.msra.mxu0 0.0
  %725 = vmatprep.subr.mxu0 0.0
  %726 = vmatpush2.xpose.msra.mxu0 0.0
  %727 = vmatprep.subr.mxu0 0.0
  %728 = vmatpush2.xpose.msra.mxu0 0.0
  %729 = vmatprep.subr.mxu0 0.0
  %730 = vmatpush2.xpose.msra.mxu0 0.0
  %731 = vmatprep.subr.mxu0 0.0
  %732 = vmatpush2.xpose.msra.mxu0 0.0
  %733 = vmatprep.subr.mxu0 0.0
  %734 = vmatpush2.xpose.msra.mxu0 0.0
  %735 = vmatprep.subr.mxu0 0.0
  %736 = vmatpush2.xpose.msra.mxu0 0.0
  %737 = vmatprep.subr.mxu0 0.0
  %738 = vmatpush2.xpose.msra.mxu0 0.0
  %739 = vmatprep.subr.mxu0 0.0
  %740 = vmatpush2.xpose.msra.mxu0 0.0
  %741 = vmatprep.subr.mxu0 0.0
  %742 = vmatpush2.xpose.msra.mxu0 0.0
  %743 = vmatprep.subr.mxu0 0.0
  %744 = vmatpush2.xpose.msra.mxu0 0.0
  %745 = vmatprep.subr.mxu0 0.0
  %746 = vmatpush2.xpose.msra.mxu0 0.0
  %747 = vmatprep.mubr.f32.mxu0 0.0
  %748 = vmatmul.mubr.f32.gmra.mxu0 %v678
  %v749 = vpop.f32.mrf.mxu0
  %v750 = vadd.f32 0.0, %v749
  %v751 = vpop.f32.mrf.mxu0
  %752 = vdwg.mxu0
  %754 = vrot.lane.b32.xlu0 %v750, 124
  %v755 = vpop.permute.xlu0 %754
  %758 = vset.pattern.permute.xlu0 0
  %759 = vperm.xlu0 %758, %v37
  %v760 = vpop.permute.xlu0 %759
  %762 = vset.pattern.permute.xlu0 0
  %763 = vperm.xlu0 %762, %v38
  %v764 = vpop.permute.xlu0 %763
  %766 = vset.pattern.permute.xlu0 0
  %767 = vperm.xlu0 %766, %v39
  %v768 = vpop.permute.xlu0 %767
  %v769 = vrot.slane %v760, 6
  %v770 = vrot.slane %v764, 6
  %v771 = vsel %vm507, %v769, %v770
  %v772 = vrot.slane %v768, 6
  %v773 = vsel %vm507, %v770, %v772
  %v776 = vadd.f32 %v750, %v771
  %v777 = vadd.f32 %v755, %v773
  %v780 = vrot.slane %v43, 6
  %v781 = vrot.slane %v44, 6
  %v782 = vsel %vm507, %v780, %v781
  %v784 = vsel %vm355, %v776, 0
  %v787 = vsel %vm355, %v777, 0
  %v789 = vsel %vm112, %v782, 0
  %791 = vmatprep.subr.mxu0 0.0
  %792 = vmatpush1.msra.mxu0 0.0
  %793 = vmatprep.subr.mxu0 0.0
  %794 = vmatpush1.msra.mxu0 0.0
  %795 = vmatprep.subr.mxu0 0.0
  %796 = vmatpush1.msra.mxu0 0.0
  %797 = vmatprep.subr.mxu0 0.0
  %798 = vmatpush1.msra.mxu0 0.0
  %799 = vmatprep.subr.mxu0 0.0
  %800 = vmatpush1.msra.mxu0 0.0
  %801 = vmatprep.subr.mxu0 0.0
  %802 = vmatpush1.msra.mxu0 0.0
  %803 = vmatprep.subr.mxu0 0.0
  %804 = vmatpush1.msra.mxu0 0.0
  %805 = vmatprep.subr.mxu0 0.0
  %806 = vmatpush1.msra.mxu0 0.0
  %807 = vmatprep.subr.mxu0 0.0
  %808 = vmatpush1.msra.mxu0 0.0
  %809 = vmatprep.subr.mxu0 0.0
  %810 = vmatpush1.msra.mxu0 0.0
  %811 = vmatprep.subr.mxu0 0.0
  %812 = vmatpush1.msra.mxu0 0.0
  %813 = vmatprep.subr.mxu0 0.0
  %814 = vmatpush1.msra.mxu0 0.0
  %815 = vmatprep.subr.mxu0 0.0
  %816 = vmatpush1.msra.mxu0 0.0
  %817 = vmatprep.subr.mxu0 0.0
  %818 = vmatpush1.msra.mxu0 0.0
  %819 = vmatprep.subr.mxu0 0.0
  %820 = vmatpush1.msra.mxu0 0.0
  %821 = vmatprep.subr.mxu0 0.0
  %822 = vmatpush1.msra.mxu0 %v789
  %823 = vmatprep.subr.mxu0 0.0
  %824 = vmatpush2.msra.mxu0 0.0
  %825 = vmatprep.subr.mxu0 0.0
  %826 = vmatpush2.msra.mxu0 0.0
  %827 = vmatprep.subr.mxu0 0.0
  %828 = vmatpush2.msra.mxu0 0.0
  %829 = vmatprep.subr.mxu0 0.0
  %830 = vmatpush2.msra.mxu0 0.0
  %831 = vmatprep.subr.mxu0 0.0
  %832 = vmatpush2.msra.mxu0 0.0
  %833 = vmatprep.subr.mxu0 0.0
  %834 = vmatpush2.msra.mxu0 0.0
  %835 = vmatprep.subr.mxu0 0.0
  %836 = vmatpush2.msra.mxu0 0.0
  %837 = vmatprep.subr.mxu0 0.0
  %838 = vmatpush2.msra.mxu0 0.0
  %839 = vmatprep.subr.mxu0 0.0
  %840 = vmatpush2.msra.mxu0 0.0
  %841 = vmatprep.subr.mxu0 0.0
  %842 = vmatpush2.msra.mxu0 0.0
  %843 = vmatprep.subr.mxu0 0.0
  %844 = vmatpush2.msra.mxu0 0.0
  %845 = vmatprep.subr.mxu0 0.0
  %846 = vmatpush2.msra.mxu0 0.0
  %847 = vmatprep.subr.mxu0 0.0
  %848 = vmatpush2.msra.mxu0 0.0
  %849 = vmatprep.subr.mxu0 0.0
  %850 = vmatpush2.msra.mxu0 0.0
  %851 = vmatprep.subr.mxu0 0.0
  %852 = vmatpush2.msra.mxu0 0.0
  %853 = vmatprep.subr.mxu0 0.0
  %854 = vmatpush2.msra.mxu0 0.0
  %855 = vmatprep.mubr.f32.mxu0 0.0
  %856 = vmatmul.mubr.f32.gmra.mxu0 %v784
  %v857 = vpop.f32.mrf.mxu0
  %v858 = vadd.f32 0.0, %v857
  %v859 = vpop.f32.mrf.mxu0
  %860 = vmatprep.mubr.f32.mxu0 0.0
  %861 = vmatmul.mubr.f32.gmra.mxu0 %v787
  %v862 = vpop.f32.mrf.mxu0
  %v863 = vadd.f32 0.0, %v862
  %v864 = vpop.f32.mrf.mxu0
  %865 = vdwg.mxu0
  %vm868 = vcmask 1045504
  %v869 = vrot.slane %v858, 2
  %v870 = vrot.slane %v863, 2
  %v871 = vsel %vm868, %v869, %v870
  %v875 = vadd.f32 %v40, %v869
  %v876 = vadd.f32 %v41, %v871
  %v877 = vadd.f32 %v42, %v870
  %v878 = vpack.c.bf16 %v876, %v875
  %v879 = vpack.c.bf16 %v877, %v877
  %vm882 = vcmask 1044480
  %v883 = vrot.slane %v878, 3
  %v884 = vrot.slane %v879, 3
  %v885 = vsel %vm882, %v883, %v884
  %v887 = vsel %vm108, %v885, 0
  %v890 = vsel %vm868, %v61, 0
  %v893 = vsel %vm868, %v62, 0
  %895 = vmatprep.subr.bf16.mxu0 0
  %896 = vmatpush1.bf16.msra.mxu0 0
  %897 = vmatprep.subr.bf16.mxu0 0
  %898 = vmatpush1.bf16.msra.mxu0 0
  %899 = vmatprep.subr.bf16.mxu0 0
  %900 = vmatpush1.bf16.msra.mxu0 0
  %901 = vmatprep.subr.bf16.mxu0 0
  %902 = vmatpush1.bf16.msra.mxu0 0
  %903 = vmatprep.subr.bf16.mxu0 0
  %904 = vmatpush1.bf16.msra.mxu0 0
  %905 = vmatprep.subr.bf16.mxu0 0
  %906 = vmatpush1.bf16.msra.mxu0 0
  %907 = vmatprep.subr.bf16.mxu0 %v893
  %908 = vmatpush1.bf16.msra.mxu0 %v890
  %909 = vmatprep.subr.bf16.mxu0 %v60
  %910 = vmatpush1.bf16.msra.mxu0 %v59
  %911 = vmatprep.subr.bf16.mxu0 0
  %912 = vmatpush2.bf16.msra.mxu0 0
  %913 = vmatprep.subr.bf16.mxu0 0
  %914 = vmatpush2.bf16.msra.mxu0 0
  %915 = vmatprep.subr.bf16.mxu0 0
  %916 = vmatpush2.bf16.msra.mxu0 0
  %917 = vmatprep.subr.bf16.mxu0 0
  %918 = vmatpush2.bf16.msra.mxu0 0
  %919 = vmatprep.subr.bf16.mxu0 0
  %920 = vmatpush2.bf16.msra.mxu0 0
  %921 = vmatprep.subr.bf16.mxu0 0
  %922 = vmatpush2.bf16.msra.mxu0 0
  %923 = vmatprep.subr.bf16.mxu0 0
  %924 = vmatpush2.bf16.msra.mxu0 0
  %925 = vmatprep.subr.bf16.mxu0 0
  %926 = vmatpush2.bf16.msra.mxu0 0
  %927 = vmatprep.mubr.bf16.mxu0 0
  %928 = vmatmul.mubr.bf16.gmra.mxu0 %v887
  %v929 = vpop.f32.mrf.mxu0
  %v930 = vadd.f32 0.0, %v929
  %v931 = vpop.f32.mrf.mxu0
  %v932 = vadd.f32 0.0, %v931
  %v933 = vpop.f32.mrf.mxu0
  %v934 = vadd.f32 0.0, %v933
  %v935 = vpop.f32.mrf.mxu0
  %v936 = vadd.f32 0.0, %v935
  %937 = vdwg.mxu0
  %938 = vst [vmem:[%s2] sm:$0xff] %v930
  %939 = vst [vmem:[%s2 + $0x8] sm:$0xff] %v932
  %940 = vst [vmem:[%s2 + $0x10] sm:$0xff] %v934
  %941 = vst [vmem:[%s2 + $0x18] sm:$0xff] %v936
  // Predicated region
  $region10: #{part_aware_forward.1} parent=0 // pred_check
    _
  $region11: #{part_aware_forward.1} parent=0 // pred_check_branch
    %943 = sbr.rel (0) target = $region13
  $region12: #{part_aware_forward.1} parent=0 // pred_region
    _
  $region13: #{part_aware_forward.1} parent=0 // pred_fallthru
    _
  // Predicated region
  $region14: #{part_aware_forward.1} parent=0 // pred_check
    _
  $region15: #{part_aware_forward.1} parent=0 // pred_check_branch
    %945 = sbr.rel (0) target = $region17
  $region16: #{part_aware_forward.1} parent=0 // pred_region
    _
  $region17: #{part_aware_forward.1} parent=0 // pred_fallthru
    _

</llo_original>
